<compile_context>
chip_gen: v7x
topology: tpu7x:2x2x1
jax: 0.10.0
libtpu: 0.0.40
codegen_flags: <defaults>
</compile_context>

<pallas_src>
import jax
import jax.numpy as jnp
import numpy as np
from jax.experimental import pallas as pl
from jax.experimental.pallas import tpu as pltpu

C = 4        # latent channels
H = W = 16   # latent spatial size
HW = H * W   # 256 -> multiple of 128 (lane friendly)
S = 8        # text sequence length
D = 32       # cross-attention embedding dim


def _cfg_denoiser_kernel(scal_ref, x_ref, wb_ref, ctxb_ref, out_ref):
    # scal_ref : SMEM (3,) f32  -> [sigma, text_cfg_scale, image_cfg_scale]
    # x_ref    : VMEM [4C, HW]  -> rows: [z_0 ; c_concat_cond ; c_concat_uncond ; z_1]
    # wb_ref   : VMEM [4C, 4C]  -> block-diag(w1_z, w1_c, w1_c, w3)
    # ctxb_ref : VMEM [C, 3]    -> per-branch (cross-attn ctx + b1) bias columns
    # out_ref  : VMEM [2C, HW]  -> rows 0..C-1 = out0 (CFG-combined), rows C.. = out1
    sigma = scal_ref[0]
    t = scal_ref[1]
    ig = scal_ref[2]
    c_scale = 1.0 / (sigma * sigma + 1.0)

    # One fused MXU dot computes all four channel-mixing products at once:
    #   h[0:C]    = w1_z @ z_0        (shared spatial term of every branch)
    #   h[C:2C]   = w1_c @ cc_cond    (image term, branches 0 & 1)
    #   h[2C:3C]  = w1_c @ cc_uncond  (image term, branch 2)
    #   h[3C:4C]  = w3   @ z_1        (output_1 head, cond chunk)
    h = jnp.dot(wb_ref[...], x_ref[...], preferred_element_type=jnp.float32)

    hz = h[0:C, :]
    hc_cond = h[C:2 * C, :]
    hc_uncond = h[2 * C:3 * C, :]
    out1 = h[3 * C:4 * C, :]

    spat_cond = (hz + hc_cond) * c_scale        # branches 0 & 1 (cond image)
    spat_uncond = (hz + hc_uncond) * c_scale    # branch 2 (uncond image)

    ctxb = ctxb_ref[...]                        # [C, 3]
    # CFG batch order (matches torch.cat order in the reference module):
    #   0: cond text + cond image, 1: uncond text + cond image, 2: uncond text + uncond image
    out_cond = spat_cond + ctxb[:, 0:1]
    out_img_cond = spat_cond + ctxb[:, 1:2]
    out_uncond = spat_uncond + ctxb[:, 2:3]

    # out_uncond + t*(out_cond - out_img_cond) + i*(out_img_cond - out_uncond)
    a_cond = t
    a_img = ig - t
    a_unc = 1.0 - ig
    out0 = a_cond * out_cond + a_img * out_img_cond + a_unc * out_uncond

    # Single full-sublane [8, 256] store (unmasked vst).
    out_ref[...] = jnp.concatenate([out0, out1], axis=0)


def cfg_denoiser_forward(z_0, z_1, sigma, cond, uncond,
                         text_cfg_scale, image_cfg_scale, params):
    _, c, h, w = z_0.shape
    hw = h * w

    cc_cond = cond['c_concat'][0]
    cc_uncond = uncond['c_concat'][0]

    # ---- dedup'd kernel inputs (each distinct tensor exactly once) ----
    x = jnp.concatenate([z_0.reshape(c, hw),
                         cc_cond.reshape(c, hw),
                         cc_uncond.reshape(c, hw),
                         z_1.reshape(c, hw)], axis=0)            # [4C, HW]

    # Block-diagonal fused weight: one MXU dot computes all channel mixes.
    w1 = params['w1']                                            # [C, 2C]
    w1z, w1c = w1[:, :c], w1[:, c:]
    zero = jnp.zeros((c, c), jnp.float32)
    wb = jnp.concatenate([
        jnp.concatenate([w1z, zero, zero, zero], axis=1),
        jnp.concatenate([zero, w1c, zero, zero], axis=1),
        jnp.concatenate([zero, zero, w1c, zero], axis=1),
        jnp.concatenate([zero, zero, zero, params['w3']], axis=1),
    ], axis=0)                                                   # [4C, 4C]

    # Cross-attn surrogate (12 floats) hoisted out of the kernel; fold b1 in.
    pooled_cond = jnp.mean(cond['c_crossattn'][0][0], axis=0)    # [D]
    pooled_uncond = jnp.mean(uncond['c_crossattn'][0][0], axis=0)
    ctx_cond = params['w2'] @ pooled_cond                        # [C]
    ctx_uncond = params['w2'] @ pooled_uncond                    # [C]
    ctxb = jnp.stack([ctx_cond, ctx_uncond, ctx_uncond], axis=1) + params['b1']  # [C, 3]

    scalars = jnp.concatenate([
        sigma.reshape(1).astype(jnp.float32),
        jnp.array([text_cfg_scale, image_cfg_scale], jnp.float32),
    ])                                                           # SMEM (3,)

    vmem = pl.BlockSpec(memory_space=pltpu.MemorySpace.VMEM)
    smem = pl.BlockSpec(memory_space=pltpu.MemorySpace.SMEM)

    out = pl.pallas_call(
        _cfg_denoiser_kernel,
        out_shape=jax.ShapeDtypeStruct((2 * c, hw), jnp.float32),
        in_specs=[smem, vmem, vmem, vmem],
        out_specs=vmem,
    )(scalars, x, wb, ctxb)

    # TODO(synk): if many CFG sets / timesteps are processed, add a leading grid
    # axis with dimension_semantics=("parallel",) to amortize launch overhead and
    # use both TensorCores on v7x.
    out0 = out[:c].reshape(1, c, h, w)
    out1 = out[c:].reshape(1, c, h, w)
    return out0, out1


def init_params(key):
    k1, k2, k3, k4 = jax.random.split(key, 4)
    return {
        'w1': jax.random.normal(k1, (C, 2 * C), jnp.float32) * 0.1,
        'b1': jax.random.normal(k2, (C, 1), jnp.float32) * 0.01,
        'w2': jax.random.normal(k3, (C, D), jnp.float32) * 0.1,
        'w3': jax.random.normal(k4, (C, C), jnp.float32) * 0.1,
    }


def reference_forward(z_0, z_1, sigma, cond, uncond, t, i, params):
    """Pure-JAX reference: full 3-branch CFG forward of the same synthetic inner model."""
    cfg_z_0 = jnp.concatenate([z_0, z_0, z_0], 0)
    cfg_z_1 = jnp.concatenate([z_1, z_1, z_1], 0)
    ca = jnp.concatenate([cond['c_crossattn'][0], uncond['c_crossattn'][0],
                          uncond['c_crossattn'][0]], 0)
    cc = jnp.concatenate([cond['c_concat'][0], cond['c_concat'][0],
                          uncond['c_concat'][0]], 0)
    x0 = jnp.concatenate([cfg_z_0, cc], axis=1)                  # [3,2C,H,W]
    c_scale = 1.0 / (sigma[0] ** 2 + 1.0)
    hconv = jnp.einsum('co,nohw->nchw', params['w1'], x0)
    pooled = jnp.mean(ca, axis=1)                                # [3,D]
    ctx = jnp.einsum('cd,nd->nc', params['w2'], pooled)
    out0 = hconv * c_scale + ctx[:, :, None, None] + params['b1'][None, :, :, None]
    out1 = jnp.einsum('ck,nkhw->nchw', params['w3'], cfg_z_1)
    out_cond_0, out_img_cond_0, out_uncond_0 = out0[0:1], out0[1:2], out0[2:3]
    out_cond_1 = out1[0:1]
    return (out_uncond_0 + t * (out_cond_0 - out_img_cond_0)
            + i * (out_img_cond_0 - out_uncond_0), out_cond_1)


if __name__ == "__main__":
    key = jax.random.PRNGKey(0)
    ks = jax.random.split(key, 6)

    z_0 = jax.random.normal(ks[0], (1, C, H, W), jnp.float32)
    z_1 = jax.random.normal(ks[1], (1, C, H, W), jnp.float32)
    sigma = jnp.array([1.5], jnp.float32)
    cond = {'c_crossattn': [jax.random.normal(ks[2], (1, S, D), jnp.float32)],
            'c_concat': [jax.random.normal(ks[3], (1, C, H, W), jnp.float32)]}
    uncond = {'c_crossattn': [jax.random.normal(ks[4], (1, S, D), jnp.float32)],
              'c_concat': [jnp.zeros((1, C, H, W), jnp.float32)]}
    params = init_params(ks[5])

    text_cfg_scale = 7.5
    image_cfg_scale = 1.5

    out0, out1 = cfg_denoiser_forward(z_0, z_1, sigma, cond, uncond,
                                      text_cfg_scale, image_cfg_scale, params)
    jax.block_until_ready((out0, out1))

    ref0, ref1 = reference_forward(z_0, z_1, sigma, cond, uncond,
                                   text_cfg_scale, image_cfg_scale, params)
    np.testing.assert_allclose(np.asarray(out0), np.asarray(ref0),
                               rtol=1e-5, atol=1e-4)
    np.testing.assert_allclose(np.asarray(out1), np.asarray(ref1),
                               rtol=1e-5, atol=1e-4)
    print("KERNEL_OK")
</pallas_src>

<mosaic_0001>
module attributes {stable_mosaic.version = 11 : i64} {
  func.func @_cfg_denoiser_kernel(%arg0: memref<3xf32, #tpu.memory_space<smem>>, %arg1: memref<16x256xf32, #tpu.memory_space<vmem>>, %arg2: memref<16x16xf32, #tpu.memory_space<vmem>>, %arg3: memref<4x3xf32, #tpu.memory_space<vmem>>, %arg4: memref<8x256xf32, #tpu.memory_space<vmem>>) attributes {dimension_semantics = [], scalar_prefetch = 0 : i64, scratch_operands = 0 : i64, tpu.core_type = #tpu.core_type<tc>} {
    %c0 = arith.constant 0 : index
    %0 = memref.load %arg0[%c0] : memref<3xf32, #tpu.memory_space<smem>>
    %c1 = arith.constant 1 : index
    %1 = memref.load %arg0[%c1] : memref<3xf32, #tpu.memory_space<smem>>
    %c2 = arith.constant 2 : index
    %2 = memref.load %arg0[%c2] : memref<3xf32, #tpu.memory_space<smem>>
    %3 = arith.mulf %0, %0 : f32
    %cst = arith.constant 1.000000e+00 : f32
    %4 = arith.addf %3, %cst : f32
    %cst_0 = arith.constant 1.000000e+00 : f32
    %5 = arith.divf %cst_0, %4 : f32
    %c0_1 = arith.constant 0 : index
    %c0_2 = arith.constant 0 : index
    %6 = vector.load %arg2[%c0_1, %c0_2] : memref<16x16xf32, #tpu.memory_space<vmem>>, vector<16x16xf32>
    %c0_3 = arith.constant 0 : index
    %c0_4 = arith.constant 0 : index
    %7 = vector.load %arg1[%c0_3, %c0_4] : memref<16x256xf32, #tpu.memory_space<vmem>>, vector<16x256xf32>
    %cst_5 = arith.constant dense<0.000000e+00> : vector<16x256xf32>
    %8 = tpu.matmul %6, %7, %cst_5 {dimension_numbers = #tpu.dot_dimension_numbers<[1], [0], [0], [1], [0, 0, 1, 1], [], []>} : vector<16x16xf32>, vector<16x256xf32>, vector<16x256xf32> -> vector<16x256xf32>
    %9 = vector.extract_strided_slice %8 {offsets = [0, 0], sizes = [4, 256], strides = [1, 1]} : vector<16x256xf32> to vector<4x256xf32>
    %10 = vector.extract_strided_slice %8 {offsets = [4, 0], sizes = [4, 256], strides = [1, 1]} : vector<16x256xf32> to vector<4x256xf32>
    %11 = vector.extract_strided_slice %8 {offsets = [8, 0], sizes = [4, 256], strides = [1, 1]} : vector<16x256xf32> to vector<4x256xf32>
    %12 = vector.extract_strided_slice %8 {offsets = [12, 0], sizes = [4, 256], strides = [1, 1]} : vector<16x256xf32> to vector<4x256xf32>
    %13 = arith.addf %9, %10 : vector<4x256xf32>
    %14 = vector.broadcast %5 : f32 to vector<4x256xf32>
    %15 = arith.mulf %13, %14 : vector<4x256xf32>
    %16 = arith.addf %9, %11 : vector<4x256xf32>
    %17 = vector.broadcast %5 : f32 to vector<4x256xf32>
    %18 = arith.mulf %16, %17 : vector<4x256xf32>
    %c0_6 = arith.constant 0 : index
    %c0_7 = arith.constant 0 : index
    %19 = vector.load %arg3[%c0_6, %c0_7] : memref<4x3xf32, #tpu.memory_space<vmem>>, vector<4x3xf32>
    %20 = vector.extract_strided_slice %19 {offsets = [0, 0], sizes = [4, 1], strides = [1, 1]} : vector<4x3xf32> to vector<4x1xf32>
    %21 = vector.broadcast %20 : vector<4x1xf32> to vector<4x256xf32>
    %22 = arith.addf %15, %21 : vector<4x256xf32>
    %23 = vector.extract_strided_slice %19 {offsets = [0, 1], sizes = [4, 1], strides = [1, 1]} : vector<4x3xf32> to vector<4x1xf32>
    %24 = vector.broadcast %23 : vector<4x1xf32> to vector<4x256xf32>
    %25 = arith.addf %15, %24 : vector<4x256xf32>
    %26 = vector.extract_strided_slice %19 {offsets = [0, 2], sizes = [4, 1], strides = [1, 1]} : vector<4x3xf32> to vector<4x1xf32>
    %27 = vector.broadcast %26 : vector<4x1xf32> to vector<4x256xf32>
    %28 = arith.addf %18, %27 : vector<4x256xf32>
    %29 = arith.subf %2, %1 : f32
    %cst_8 = arith.constant 1.000000e+00 : f32
    %30 = arith.subf %cst_8, %2 : f32
    %31 = vector.broadcast %1 : f32 to vector<4x256xf32>
    %32 = arith.mulf %31, %22 : vector<4x256xf32>
    %33 = vector.broadcast %29 : f32 to vector<4x256xf32>
    %34 = arith.mulf %33, %25 : vector<4x256xf32>
    %35 = arith.addf %32, %34 : vector<4x256xf32>
    %36 = vector.broadcast %30 : f32 to vector<4x256xf32>
    %37 = arith.mulf %36, %28 : vector<4x256xf32>
    %38 = arith.addf %35, %37 : vector<4x256xf32>
    %39 = tpu.concatenate %38, %12 in 0 : vector<4x256xf32>, vector<4x256xf32> -> vector<8x256xf32>
    %c0_9 = arith.constant 0 : index
    %c0_10 = arith.constant 0 : index
    %40 = vector.load %arg4[%c0_9, %c0_10] : memref<8x256xf32, #tpu.memory_space<vmem>>, vector<8x256xf32>
    tpu.vector_store %arg4[%c0_9, %c0_10], %39 {strides = array<i32>} : memref<8x256xf32, #tpu.memory_space<vmem>>, vector<8x256xf32>,
    return
  }
}

</mosaic_0001>

<llo_original>
// kernel: tpu_custom_call.1
$region0: #{tpu_custom_call.1}
  #allocation0 [shape = 'u32[]', space=smem, size = 0x4, offset = 0x4, fixed_abs, tag = 'smem constant byte address 0x4 - core index']
  #allocation1 [shape = 'u32[144,128]{1,0:T(1,128)}', space=vmem, size = 0x12000, scoped, tag = 'internal scratch']
  %s0 = inlined_call_operand.hbm [shape: f32[3], index: 0, kind: input, shape index: {}]
  %s1 = inlined_call_operand.hbm [shape: f32[16,256], index: 1, kind: input, shape index: {}]
  %s2 = inlined_call_operand.hbm [shape: f32[16,16], index: 2, kind: input, shape index: {}]
  %s3 = inlined_call_operand.vmem [shape: f32[4,3], index: 3, kind: input, shape index: {}]
  %s4 = inlined_call_operand.hbm [shape: f32[8,256], index: 4, kind: output, shape index: {}]
  %s5 = sld [smem:[#allocation0]]
  $region38: #{tpu_custom_call.1} parent=0
    _
  %s7 = ssub.s32 1, %s5
  %s8 = scalar_select 0, %s7, %s5
  $region1: #{tpu_custom_call.1} parent=0
    #allocation2 [shape = 'u8[512]{0}', space=smem, size = 0x200, scoped, tag = 'input window, operand 0, single buffered']
    #allocation3 [shape = 's32[1]{0}', space=sflag, size = 0x4, scoped, tag = 'scoped memory for tpu_custom_call.1']
    #allocation4 [shape = 's32[1]{0}', space=sflag, size = 0x4, scoped, tag = 'scoped memory for tpu_custom_call.1']
    #allocation5 [shape = 's32[1]{0}', space=sflag, size = 0x4, scoped, tag = 'scoped memory for tpu_custom_call.1']
    #allocation6 [shape = 'u8[16384]{0}', space=vmem, size = 0x4000, scoped, tag = 'input window, operand 1, single buffered']
    #allocation7 [shape = 'u8[8192]{0}', space=vmem, size = 0x2000, scoped, tag = 'input window, operand 2, single buffered']
    #allocation8 [shape = 's32[1]{0}', space=sflag, size = 0x4, scoped, tag = 'scoped memory for tpu_custom_call.1']
    #allocation9 [shape = 'u8[8192]{0}', space=vmem, size = 0x2000, scoped, tag = 'output window, operand 0, single buffered']
    %9 = vsyncpa [#allocation5], 0
    %10 = vsyncpa [#allocation3], 0
    %11 = vsyncpa [#allocation8], 0
    %12 = vsyncpa [#allocation4], 0
    // Predicated region
    $region2: #{tpu_custom_call.1} parent=1 // pred_check
      _
    $region3: #{tpu_custom_call.1} parent=1 // pred_check_branch
      %14 = sbr.rel (0) target = $region5
    $region4: #{tpu_custom_call.1} parent=1 // pred_region
      %s16 = ssub.s32 16, 16
      %17 = vsyncadd [#allocation5], %s16
      %20 = dma.hbm_to_smem %s0, 16, [#allocation2], [#allocation5]
    $region5: #{tpu_custom_call.1} parent=1 // pred_fallthru
      _
    // Predicated region
    $region6: #{tpu_custom_call.1} parent=1 // pred_check
      _
    $region7: #{tpu_custom_call.1} parent=1 // pred_check_branch
      %22 = sbr.rel (0) target = $region9
    $region8: #{tpu_custom_call.1} parent=1 // pred_region
      %s24 = ssub.s32 512, 512
      %25 = vsyncadd [#allocation3], %s24
      %s26 = sshll.u32 [#allocation6], 4
      %s27 = int_to_ptr.vmem [resolvable:$true] %s26
      %32 = dma.hbm_to_vmem [thread:$0]  %s1, 512, %s27, [#allocation3], 256, 256, 16
    $region9: #{tpu_custom_call.1} parent=1 // pred_fallthru
      _
    // Predicated region
    $region10: #{tpu_custom_call.1} parent=1 // pred_check
      _
    $region11: #{tpu_custom_call.1} parent=1 // pred_check_branch
      %34 = sbr.rel (0) target = $region13
    $region12: #{tpu_custom_call.1} parent=1 // pred_region
      %s36 = ssub.s32 256, 256
      %37 = vsyncadd [#allocation8], %s36
      %s38 = sshll.u32 [#allocation7], 4
      %s39 = int_to_ptr.vmem [resolvable:$true] %s38
      %44 = dma.hbm_to_vmem [thread:$0]  %s2, 256, %s39, [#allocation8], 128, 128, 8
    $region13: #{tpu_custom_call.1} parent=1 // pred_fallthru
      _
    // Predicated region
    $region14: #{tpu_custom_call.1} parent=1 // pred_check
      _
    $region15: #{tpu_custom_call.1} parent=1 // pred_check_branch
      %46 = sbr.rel (0) target = $region17
    $region16: #{tpu_custom_call.1} parent=1 // pred_region
      _
    $region17: #{tpu_custom_call.1} parent=1 // pred_fallthru
      _
    // Predicated region
    $region18: #{tpu_custom_call.1} parent=1 // pred_check
      _
    $region19: #{tpu_custom_call.1} parent=1 // pred_check_branch
      %48 = sbr.rel (0) target = $region21
    $region20: #{tpu_custom_call.1} parent=1 // pred_region
      %49 = dma.done [#allocation5], 16
    $region21: #{tpu_custom_call.1} parent=1 // pred_fallthru
      _
    // Predicated region
    $region22: #{tpu_custom_call.1} parent=1 // pred_check
      _
    $region23: #{tpu_custom_call.1} parent=1 // pred_check_branch
      %51 = sbr.rel (0) target = $region25
    $region24: #{tpu_custom_call.1} parent=1 // pred_region
      %52 = dma.done [#allocation3], 512
    $region25: #{tpu_custom_call.1} parent=1 // pred_fallthru
      _
    // Predicated region
    $region26: #{tpu_custom_call.1} parent=1 // pred_check
      _
    $region27: #{tpu_custom_call.1} parent=1 // pred_check_branch
      %54 = sbr.rel (0) target = $region29
    $region28: #{tpu_custom_call.1} parent=1 // pred_region
      %55 = dma.done [#allocation8], 256
    $region29: #{tpu_custom_call.1} parent=1 // pred_fallthru
      _
    %56 = sfence
    %s57 = sld [smem:[#allocation2]]
    %s58 = sld [smem:[#allocation2 + $0x1]]
    %s59 = sld [smem:[#allocation2 + $0x2]]
    %s60 = smul.f32 %s57, %s57
    %s61 = sadd.f32 %s60, 1.0
    %v62 = vstv %s61
    %v63 = vrcp.pop %v62
    %s64 = vtos %v63
    %v65 = vld [vmem:[#allocation7] sm:$0xff]
    %v66 = vld [vmem:[#allocation7 + $0x8] sm:$0xff]
    %v67 = vld [vmem:[#allocation6] sm:$0xff]
    %v68 = vld [vmem:[#allocation6 + $0x8] sm:$0xff]
    %v69 = vld [vmem:[#allocation6 + $0x10] sm:$0xff]
    %v70 = vld [vmem:[#allocation6 + $0x18] sm:$0xff]
    %vm71 = vcmask 130048
    %v73 = vsel %vm71, %v65, 0
    %v76 = vsel %vm71, %v66, 0
    %78 = vmatprep.subr.mxu0 %v68
    %79 = vmatpush1.msra.mxu0 %v67
    %80 = vmatprep.subr.mxu0 %v70
    %81 = vmatpush1.msra.mxu0 %v69
    %82 = vmatprep.subr.mxu0 0.0
    %83 = vmatpush1.msra.mxu0 0.0
    %84 = vmatprep.subr.mxu0 0.0
    %85 = vmatpush1.msra.mxu0 0.0
    %86 = vmatprep.subr.mxu0 0.0
    %87 = vmatpush1.msra.mxu0 0.0
    %88 = vmatprep.subr.mxu0 0.0
    %89 = vmatpush1.msra.mxu0 0.0
    %90 = vmatprep.subr.mxu0 0.0
    %91 = vmatpush1.msra.mxu0 0.0
    %92 = vmatprep.subr.mxu0 0.0
    %93 = vmatpush1.msra.mxu0 0.0
    %94 = vmatprep.subr.mxu0 0.0
    %95 = vmatpush1.msra.mxu0 0.0
    %96 = vmatprep.subr.mxu0 0.0
    %97 = vmatpush1.msra.mxu0 0.0
    %98 = vmatprep.subr.mxu0 0.0
    %99 = vmatpush1.msra.mxu0 0.0
    %100 = vmatprep.subr.mxu0 0.0
    %101 = vmatpush1.msra.mxu0 0.0
    %102 = vmatprep.subr.mxu0 0.0
    %103 = vmatpush1.msra.mxu0 0.0
    %104 = vmatprep.subr.mxu0 0.0
    %105 = vmatpush1.msra.mxu0 0.0
    %106 = vmatprep.subr.mxu0 0.0
    %107 = vmatpush1.msra.mxu0 0.0
    %108 = vmatprep.subr.mxu0 0.0
    %109 = vmatpush1.msra.mxu0 0.0
    %110 = vmatprep.subr.mxu0 0.0
    %111 = vmatpush1.msra.mxu0 0.0
    %112 = vmatprep.subr.mxu0 0.0
    %113 = vmatpush1.msra.mxu0 0.0
    %114 = vmatprep.subr.mxu0 0.0
    %115 = vmatpush1.msra.mxu0 0.0
    %116 = vmatprep.subr.mxu0 0.0
    %117 = vmatpush1.msra.mxu0 0.0
    %118 = vmatprep.subr.mxu0 0.0
    %119 = vmatpush1.msra.mxu0 0.0
    %120 = vmatprep.subr.mxu0 0.0
    %121 = vmatpush1.msra.mxu0 0.0
    %122 = vmatprep.subr.mxu0 0.0
    %123 = vmatpush1.msra.mxu0 0.0
    %124 = vmatprep.subr.mxu0 0.0
    %125 = vmatpush1.msra.mxu0 0.0
    %126 = vmatprep.subr.mxu0 0.0
    %127 = vmatpush1.msra.mxu0 0.0
    %128 = vmatprep.subr.mxu0 0.0
    %129 = vmatpush1.msra.mxu0 0.0
    %130 = vmatprep.subr.mxu0 0.0
    %131 = vmatpush1.msra.mxu0 0.0
    %132 = vmatprep.subr.mxu0 0.0
    %133 = vmatpush1.msra.mxu0 0.0
    %134 = vmatprep.subr.mxu0 0.0
    %135 = vmatpush1.msra.mxu0 0.0
    %136 = vmatprep.subr.mxu0 0.0
    %137 = vmatpush1.msra.mxu0 0.0
    %138 = vmatprep.subr.mxu0 0.0
    %139 = vmatpush1.msra.mxu0 0.0
    %140 = vmatprep.subr.mxu0 0.0
    %141 = vmatpush1.msra.mxu0 0.0
    %142 = vmatprep.mubr.f32.mxu0 0.0
    %143 = vmatmul.mubr.f32.gmra.mrb[0].mxu0 %v73
    %v144 = vpop.f32.mrb[0].mxu0
    %v145 = vadd.f32 0.0, %v144
    %v146 = vpop.f32.mrb[0].mxu0
    %v147 = vadd.f32 0.0, %v146
    %148 = vmatprep.mubr.f32.mxu0 0.0
    %149 = vmatmul.mubr.f32.gmra.mrb[0].mxu0 %v76
    %v150 = vpop.f32.mrb[0].mxu0
    %v151 = vadd.f32 0.0, %v150
    %v152 = vpop.f32.mrb[0].mxu0
    %v153 = vadd.f32 0.0, %v152
    %154 = vdwg.mxu0
    %v157 = vrot.slane %v145, 4
    %v158 = vrot.slane %v147, 4
    %v161 = vadd.f32 %v145, %v157
    %v162 = vadd.f32 %v147, %v158
    %v163 = vstv %s64
    %v164 = vmul.f32 %v161, %v163
    %v165 = vmul.f32 %v162, %v163
    %v166 = vadd.f32 %v145, %v151
    %v167 = vadd.f32 %v147, %v153
    %v168 = vmul.f32 %v166, %v163
    %v169 = vmul.f32 %v167, %v163
    %v170 = vld [vmem:[%s3] sm:$0xf]
    %172 = vset.pattern.permute.xlu0 0
    %173 = vperm.xlu0 %172, %v170
    %v174 = vpop.permute.xlu0 %173
    %v176 = vadd.f32 %v164, %v174
    %v177 = vadd.f32 %v165, %v174
    %178 = vset.pattern.permute.xlu0 1
    %179 = vperm.xlu0 %178, %v170
    %v180 = vpop.permute.xlu0 %179
    %v182 = vadd.f32 %v164, %v180
    %v183 = vadd.f32 %v165, %v180
    %184 = vset.pattern.permute.xlu0 2
    %185 = vperm.xlu0 %184, %v170
    %v186 = vpop.permute.xlu0 %185
    %v188 = vadd.f32 %v168, %v186
    %v189 = vadd.f32 %v169, %v186
    %s190 = ssub.f32 %s59, %s58
    %s191 = ssub.f32 1.0, %s59
    %v192 = vstv %s58
    %v193 = vmul.f32 %v192, %v176
    %v194 = vmul.f32 %v192, %v177
    %v195 = vstv %s190
    %v196 = vmul.f32 %v195, %v182
    %v197 = vmul.f32 %v195, %v183
    %v198 = vadd.f32 %v193, %v196
    %v199 = vadd.f32 %v194, %v197
    %v200 = vstv %s191
    %v201 = vmul.f32 %v200, %v188
    %v202 = vmul.f32 %v200, %v189
    %v203 = vadd.f32 %v198, %v201
    %v204 = vadd.f32 %v199, %v202
    %vm205 = vcmask 1043456
    %v206 = vsel %vm205, %v203, %v151
    %v207 = vsel %vm205, %v204, %v153
    %208 = vst [vmem:[#allocation9] sm:$0xff] %v206
    %209 = vst [vmem:[#allocation9 + $0x8] sm:$0xff] %v207
    // Predicated region
    $region30: #{tpu_custom_call.1} parent=1 // pred_check
      _
    $region31: #{tpu_custom_call.1} parent=1 // pred_check_branch
      %211 = sbr.rel (0) target = $region33
    $region32: #{tpu_custom_call.1} parent=1 // pred_region
      %s213 = ssub.s32 256, 256
      %214 = vsyncadd [#allocation4], %s213
      %s216 = sshll.u32 [#allocation9], 4
      %s217 = int_to_ptr.vmem [resolvable:$true] %s216
      %219 = dma.vmem_to_hbm [thread:$0]  %s217, 256, %s4, [#allocation4]
    $region33: #{tpu_custom_call.1} parent=1 // pred_fallthru
      _
    // Predicated region
    $region34: #{tpu_custom_call.1} parent=1 // pred_check
      _
    $region35: #{tpu_custom_call.1} parent=1 // pred_check_branch
      %221 = sbr.rel (0) target = $region37
    $region36: #{tpu_custom_call.1} parent=1 // pred_region
      %222 = dma.done [#allocation4], 256
    $region37: #{tpu_custom_call.1} parent=1 // pred_fallthru
      _
    %223 = vsyncpa [#allocation3], 1
    %224 = vsyncpa [#allocation8], 1
    %225 = vsyncpa [#allocation4], 1
    %226 = vsyncpa [#allocation5], 1

</llo_original>
